<compile_context>
chip_gen: v6e
topology: v6e:2x2x1
jax: 0.10.0
libtpu: 0.0.40
codegen_flags: <defaults>
</compile_context>

<pallas_src>
import functools

import jax
import jax.numpy as jnp
from jax import lax
from jax.experimental import pallas as pl
from jax.experimental.pallas import tpu as pltpu


def _round_up(x, m):
    return (x + m - 1) // m * m


def _choose_tk(d, mnc_pad, weight_block_budget=4 << 20):
    """Largest K tile (multiple of 512 dividing D) whose bf16 weight block fits the
    per-buffer budget; falls back to the full D (no K-tiling) for small problems."""
    if d * mnc_pad * 2 <= weight_block_budget:
        return d
    tk = max(512, ((weight_block_budget // (mnc_pad * 2)) // 512) * 512)
    tk = min(tk, d)
    while tk >= 512:
        if d % tk == 0:
            return tk
        tk -= 512
    return d


def _ensemble_kernel(x_ref, w_ref, b_ref, g_ref, out_ref, acc_ref, *,
                     num_models, num_classes, vote_threshold):
    """Fused ensemble forward for one (batch-tile, K-tile) grid step."""
    k = pl.program_id(1)

    @pl.when(k == 0)
    def _init():
        acc_ref[...] = jnp.zeros_like(acc_ref)

    # (TB, TK) @ (TK, M*NC) on the MXU; bf16 operands (cast here, not in the
    # wrapper), f32 accumulation into VMEM scratch.
    acc_ref[...] += jnp.dot(x_ref[...].astype(jnp.bfloat16), w_ref[...],
                            preferred_element_type=jnp.float32)

    @pl.when(k == pl.num_programs(1) - 1)
    def _epilogue():
        tb = acc_ref.shape[0]
        out_w = out_ref.shape[1]
        nc = num_classes

        # logits + bias + Gumbel noise (tau = 1; hard argmax is tau-invariant).
        y = acc_ref[...] + b_ref[...] + g_ref[...].astype(jnp.float32)  # (TB, M*NC)

        # Per-model hard one-hot votes on a (TB, NC) accumulator: one max-reduce
        # and one NC-wide compare per model (M is small: unrolled).  (== max)
        # matches torch.argmax except on exact float ties (measure-zero under
        # Gumbel noise).
        counts = jnp.zeros((tb, nc), jnp.float32)
        for m in range(num_models):
            y_m = y[:, m * nc:(m + 1) * nc]                 # static lane slice
            row_max = jnp.max(y_m, axis=-1, keepdims=True)  # (TB, 1)
            counts = counts + (y_m == row_max).astype(jnp.float32)

        # Consensus rule: keep rows whose top vote count reaches M * consensus_pc,
        # otherwise emit the abstain one-hot at column NC.
        keep = jnp.max(counts, axis=-1, keepdims=True) >= jnp.float32(vote_threshold)
        col = lax.broadcasted_iota(jnp.int32, (tb, out_w), 1)
        abstain = (col == nc).astype(jnp.float32)

        # Lane-dense full-width store of the background (zeros / abstain one-hot),
        # then overlay the NC vote lanes (one narrow store per batch tile).
        out_ref[...] = jnp.where(keep, 0.0, abstain)
        out_ref[:, :nc] = jnp.where(keep, counts, 0.0)


def prepare_ensemble_params(weights, biases):
    """One-time (init-time) fusion of the M linear heads into a single slab.

    weights: (M, D, NC) f32, biases: (M, 1, NC) f32
      -> w_slab: (D, M*NC) bf16, b_slab: (1, M*NC) f32.
    Doing this per forward call was the dominant HBM traffic in the previous
    version; store the slab as the parameter instead.
    """
    m, d, nc = weights.shape
    w_slab = jnp.transpose(weights, (1, 0, 2)).reshape(d, m * nc).astype(jnp.bfloat16)
    b_slab = jnp.transpose(biases, (1, 0, 2)).reshape(1, m * nc).astype(jnp.float32)
    return w_slab, b_slab


def ensemble_forward(x, w_slab, b_slab, *, num_models, num_classes,
                     key=None, gumbel=None, consensus_pc=1.0, tb=None, tk=None):
    """x: (B, C, H, W) float; returns (B, NC + 1) f32 vote/abstain rows."""
    B = x.shape[0]
    D = w_slab.shape[0]
    MNC = w_slab.shape[1]
    assert MNC == num_models * num_classes
    out_dim = num_classes + 1
    out_pad = _round_up(out_dim, 128)      # lane-dense output slab width
    mnc_pad = _round_up(MNC, 128)          # lane-padded logits width in VMEM

    # Batch tiling: multiple-of-8 sublane tiles; pad B only when needed.
    if tb is None:
        tb = min(512, _round_up(B, 8))
    tb = _round_up(tb, 8)
    b_pad = _round_up(B, tb)
    nb = b_pad // tb

    # K-tiling over D bounds the resident weight block (v7x: 64 MiB VMEM).
    if tk is None:
        tk = _choose_tk(D, mnc_pad)
    assert D % tk == 0, (D, tk)
    nk = D // tk

    x_flat = x.reshape(B, D)               # native dtype; bf16 cast is in-kernel
    if b_pad != B:
        x_flat = jnp.pad(x_flat, ((0, b_pad - B), (0, 0)))

    # Gumbel noise as a bf16 stream (cast up in-kernel).
    # TODO(synk): generate in-kernel with pltpu.prng_seed/prng_random_bits to drop
    # this stream entirely on hardware (the two logs go to the idle EUP slot).
    if gumbel is None:
        assert key is not None, "provide either `key` or `gumbel`"
        gumbel = jax.random.gumbel(key, (b_pad, MNC), jnp.bfloat16)
    else:
        gumbel = gumbel.astype(jnp.bfloat16)
        if gumbel.shape[0] != b_pad:
            gumbel = jnp.pad(gumbel, ((0, b_pad - gumbel.shape[0]), (0, 0)))

    kernel = functools.partial(_ensemble_kernel, num_models=num_models,
                               num_classes=num_classes,
                               vote_threshold=float(num_models * consensus_pc))

    # Scoped-VMEM budget from the actual footprint: double-buffered streaming
    # blocks + lane-padded weight block + f32 accumulator.  Never below the
    # 32 MiB default, capped at v7x's 64 MiB physical VMEM.
    est = (2 * tb * tk * x_flat.dtype.itemsize      # x blocks
           + 2 * tb * mnc_pad * 2                   # gumbel blocks (bf16)
           + 2 * tb * out_pad * 4                   # output blocks
           + 2 * tk * mnc_pad * 2                   # weight blocks (bf16)
           + 2 * 8 * mnc_pad * 4                    # bias block
           + tb * mnc_pad * 4)                      # f32 logits accumulator
    vmem_limit = int(min(max(2 * est, 32 << 20), 64 << 20))

    out_padded = pl.pallas_call(
        kernel,
        out_shape=jax.ShapeDtypeStruct((b_pad, out_pad), jnp.float32),
        grid_spec=pltpu.PrefetchScalarGridSpec(
            num_scalar_prefetch=0,
            grid=(nb, nk),
            in_specs=[
                pl.BlockSpec((tb, tk), lambda i, k: (i, k)),    # x: streamed
                pl.BlockSpec((tk, MNC), lambda i, k: (k, 0)),   # W slab: k-only index
                pl.BlockSpec((1, MNC), lambda i, k: (0, 0)),    # bias: resident
                pl.BlockSpec((tb, MNC), lambda i, k: (i, 0)),   # gumbel: streamed
            ],
            out_specs=pl.BlockSpec((tb, out_pad), lambda i, k: (i, 0)),
            scratch_shapes=[pltpu.VMEM((tb, MNC), jnp.float32)],
        ),
        compiler_params=pltpu.CompilerParams(
            dimension_semantics=("parallel", "arbitrary"),
            vmem_limit_bytes=vmem_limit),
    )(x_flat, w_slab, b_slab, gumbel)

    return out_padded[:B, :out_dim]


def ensemble_reference(x, w_slab, b_slab, gumbel, *, num_models, num_classes,
                       consensus_pc=1.0):
    """Pure-JAX reference with kernel-identical operand dtypes."""
    B = x.shape[0]
    D = w_slab.shape[0]
    y = jnp.dot(x.reshape(B, D).astype(jnp.bfloat16), w_slab,
                preferred_element_type=jnp.float32)
    y = y + b_slab + gumbel.astype(jnp.float32)
    y = y.reshape(B, num_models, num_classes)
    votes = jax.nn.one_hot(jnp.argmax(y, axis=-1), num_classes, dtype=jnp.float32)
    counts = votes.sum(axis=1)                                     # (B, NC)
    preds = jnp.concatenate([counts, jnp.zeros((B, 1), jnp.float32)], axis=-1)
    keep = counts.max(axis=-1, keepdims=True) >= (num_models * consensus_pc)
    abstain = jax.nn.one_hot(jnp.full((B,), num_classes), num_classes + 1,
                             dtype=jnp.float32)
    return jnp.where(keep, preds, abstain)


if __name__ == "__main__":
    key = jax.random.PRNGKey(0)
    B, C, H, W = 2, 4, 16, 16      # small NCHW input
    M, NC = 3, 10                  # 3 ensemble members, 10 classes
    D = C * H * W

    kx, kw, kb, kg = jax.random.split(key, 4)
    x = jax.random.normal(kx, (B, C, H, W), jnp.float32)
    weights = jax.random.normal(kw, (M, D, NC), jnp.float32) * 0.02
    biases = jax.random.normal(kb, (M, 1, NC), jnp.float32) * 0.02

    # One-time parameter fusion (init time, NOT per forward call).
    w_slab, b_slab = prepare_ensemble_params(weights, biases)

    # Shared noise draw so kernel and reference see bit-identical Gumbel samples.
    gumbel = jax.random.gumbel(kg, (B, M * NC), jnp.bfloat16)

    out = ensemble_forward(x, w_slab, b_slab, num_models=M, num_classes=NC,
                           gumbel=gumbel, consensus_pc=1.0)
    out = jax.block_until_ready(out)
    assert out.shape == (B, NC + 1), out.shape

    ref = ensemble_reference(x, w_slab, b_slab, gumbel, num_models=M,
                             num_classes=NC, consensus_pc=1.0)
    assert jnp.array_equal(out, ref), (out, ref)

    # Each row is either a vote histogram (sum == M) or the abstain one-hot.
    row_sums = jnp.sum(out, axis=-1)
    assert bool(jnp.all((row_sums == M) | (out[:, -1] == 1.0)))

    # Exercise the K-tiled accumulator path (the large-D / v7x configuration).
    out_kt = ensemble_forward(x, w_slab, b_slab, num_models=M, num_classes=NC,
                              gumbel=gumbel, consensus_pc=1.0, tk=256)
    out_kt = jax.block_until_ready(out_kt)
    assert jnp.array_equal(out_kt, ref), (out_kt, ref)

    print("KERNEL_OK")
</pallas_src>

<mosaic_0001>
module attributes {stable_mosaic.version = 11 : i64} {
  func.func @_ensemble_kernel(%arg0: i32, %arg1: i32, %arg2: memref<8x1024xf32, #tpu.memory_space<vmem>>, %arg3: memref<1024x30xbf16, #tpu.memory_space<vmem>>, %arg4: memref<1x30xf32, #tpu.memory_space<vmem>>, %arg5: memref<8x30xbf16, #tpu.memory_space<vmem>>, %arg6: memref<8x128xf32, #tpu.memory_space<vmem>>, %arg7: memref<8x30xf32, #tpu.memory_space<vmem>>) attributes {dimension_semantics = [#tpu.dimension_semantics<parallel>, #tpu.dimension_semantics<arbitrary>], iteration_bounds = array<i64: 1, 1>, scalar_prefetch = 0 : i64, scratch_operands = 1 : i64, tpu.core_type = #tpu.core_type<tc>, window_params = [{transform_indices = @transform_0, window_bounds = array<i64: 8, 1024>}, {transform_indices = @transform_1, window_bounds = array<i64: 1024, 30>}, {pipeline_mode = #tpu.pipeline_mode<synchronous>, transform_indices = @transform_2, window_bounds = array<i64: 1, 30>}, {transform_indices = @transform_3, window_bounds = array<i64: 8, 30>}, {transform_indices = @transform_4, window_bounds = array<i64: 8, 128>}]} {
    %c0_i32 = arith.constant 0 : i32
    %0 = arith.cmpi eq, %arg1, %c0_i32 : i32
    %1 = arith.extui %0 : i1 to i32
    %c0_i32_0 = arith.constant 0 : i32
    %2 = arith.cmpi ne, %1, %c0_i32_0 : i32
    scf.if %2 {
      %cst_10 = arith.constant 0.000000e+00 : f32
      %13 = vector.broadcast %cst_10 : f32 to vector<8x30xf32>
      %c0_11 = arith.constant 0 : index
      %c0_12 = arith.constant 0 : index
      %14 = vector.load %arg7[%c0_11, %c0_12] : memref<8x30xf32, #tpu.memory_space<vmem>>, vector<8x30xf32>
      tpu.vector_store %arg7[%c0_11, %c0_12], %13 {strides = array<i32>} : memref<8x30xf32, #tpu.memory_space<vmem>>, vector<8x30xf32>,
    } else {
    }
    %c0 = arith.constant 0 : index
    %c0_1 = arith.constant 0 : index
    %3 = vector.load %arg7[%c0, %c0_1] : memref<8x30xf32, #tpu.memory_space<vmem>>, vector<8x30xf32>
    %c0_2 = arith.constant 0 : index
    %c0_3 = arith.constant 0 : index
    %4 = vector.load %arg2[%c0_2, %c0_3] : memref<8x1024xf32, #tpu.memory_space<vmem>>, vector<8x1024xf32>
    %5 = arith.truncf %4 : vector<8x1024xf32> to vector<8x1024xbf16>
    %c0_4 = arith.constant 0 : index
    %c0_5 = arith.constant 0 : index
    %6 = vector.load %arg3[%c0_4, %c0_5] : memref<1024x30xbf16, #tpu.memory_space<vmem>>, vector<1024x30xbf16>
    %cst = arith.constant dense<0.000000e+00> : vector<8x30xf32>
    %7 = tpu.matmul %5, %6, %cst {dimension_numbers = #tpu.dot_dimension_numbers<[1], [0], [0], [1], [0, 0, 1, 1], [], []>} : vector<8x1024xbf16>, vector<1024x30xbf16>, vector<8x30xf32> -> vector<8x30xf32>
    %8 = arith.addf %3, %7 : vector<8x30xf32>
    %c0_6 = arith.constant 0 : index
    %c0_7 = arith.constant 0 : index
    %9 = vector.load %arg7[%c0_6, %c0_7] : memref<8x30xf32, #tpu.memory_space<vmem>>, vector<8x30xf32>
    tpu.vector_store %arg7[%c0_6, %c0_7], %8 {strides = array<i32>} : memref<8x30xf32, #tpu.memory_space<vmem>>, vector<8x30xf32>,
    %c0_i32_8 = arith.constant 0 : i32
    %10 = arith.cmpi eq, %arg1, %c0_i32_8 : i32
    %11 = arith.extui %10 : i1 to i32
    %c0_i32_9 = arith.constant 0 : i32
    %12 = arith.cmpi ne, %11, %c0_i32_9 : i32
    scf.if %12 {
      %c0_10 = arith.constant 0 : index
      %c0_11 = arith.constant 0 : index
      %13 = vector.load %arg7[%c0_10, %c0_11] : memref<8x30xf32, #tpu.memory_space<vmem>>, vector<8x30xf32>
      %c0_12 = arith.constant 0 : index
      %c0_13 = arith.constant 0 : index
      %14 = vector.load %arg4[%c0_12, %c0_13] : memref<1x30xf32, #tpu.memory_space<vmem>>, vector<1x30xf32>
      %15 = vector.broadcast %14 : vector<1x30xf32> to vector<8x30xf32>
      %16 = arith.addf %13, %15 : vector<8x30xf32>
      %c0_14 = arith.constant 0 : index
      %c0_15 = arith.constant 0 : index
      %17 = vector.load %arg5[%c0_14, %c0_15] : memref<8x30xbf16, #tpu.memory_space<vmem>>, vector<8x30xbf16>
      %18 = arith.extf %17 : vector<8x30xbf16> to vector<8x30xf32>
      %19 = arith.addf %16, %18 : vector<8x30xf32>
      %cst_16 = arith.constant 0.000000e+00 : f32
      %20 = vector.broadcast %cst_16 : f32 to vector<8x10xf32>
      %21 = vector.extract_strided_slice %19 {offsets = [0, 0], sizes = [8, 10], strides = [1, 1]} : vector<8x30xf32> to vector<8x10xf32>
      %cst_17 = arith.constant dense<0xFF800000> : vector<8xf32>
      %22 = vector.multi_reduction <maximumf>, %21, %cst_17 [1] : vector<8x10xf32> to vector<8xf32>
      %23 = vector.shape_cast %22 : vector<8xf32> to vector<8x1xf32>
      %24 = vector.broadcast %23 : vector<8x1xf32> to vector<8x10xf32>
      %25 = arith.cmpf oeq, %21, %24 : vector<8x10xf32>
      %26 = arith.extui %25 : vector<8x10xi1> to vector<8x10xi32>
      %27 = arith.sitofp %26 : vector<8x10xi32> to vector<8x10xf32>
      %28 = arith.addf %20, %27 : vector<8x10xf32>
      %29 = vector.extract_strided_slice %19 {offsets = [0, 10], sizes = [8, 10], strides = [1, 1]} : vector<8x30xf32> to vector<8x10xf32>
      %cst_18 = arith.constant dense<0xFF800000> : vector<8xf32>
      %30 = vector.multi_reduction <maximumf>, %29, %cst_18 [1] : vector<8x10xf32> to vector<8xf32>
      %31 = vector.shape_cast %30 : vector<8xf32> to vector<8x1xf32>
      %32 = vector.broadcast %31 : vector<8x1xf32> to vector<8x10xf32>
      %33 = arith.cmpf oeq, %29, %32 : vector<8x10xf32>
      %34 = arith.extui %33 : vector<8x10xi1> to vector<8x10xi32>
      %35 = arith.sitofp %34 : vector<8x10xi32> to vector<8x10xf32>
      %36 = arith.addf %28, %35 : vector<8x10xf32>
      %37 = vector.extract_strided_slice %19 {offsets = [0, 20], sizes = [8, 10], strides = [1, 1]} : vector<8x30xf32> to vector<8x10xf32>
      %cst_19 = arith.constant dense<0xFF800000> : vector<8xf32>
      %38 = vector.multi_reduction <maximumf>, %37, %cst_19 [1] : vector<8x10xf32> to vector<8xf32>
      %39 = vector.shape_cast %38 : vector<8xf32> to vector<8x1xf32>
      %40 = vector.broadcast %39 : vector<8x1xf32> to vector<8x10xf32>
      %41 = arith.cmpf oeq, %37, %40 : vector<8x10xf32>
      %42 = arith.extui %41 : vector<8x10xi1> to vector<8x10xi32>
      %43 = arith.sitofp %42 : vector<8x10xi32> to vector<8x10xf32>
      %44 = arith.addf %36, %43 : vector<8x10xf32>
      %cst_20 = arith.constant dense<0xFF800000> : vector<8xf32>
      %45 = vector.multi_reduction <maximumf>, %44, %cst_20 [1] : vector<8x10xf32> to vector<8xf32>
      %46 = vector.shape_cast %45 : vector<8xf32> to vector<8x1xf32>
      %cst_21 = arith.constant 3.000000e+00 : f32
      %47 = vector.broadcast %cst_21 : f32 to vector<8x1xf32>
      %48 = arith.cmpf oge, %46, %47 : vector<8x1xf32>
      %49 = tpu.iota {dimensions = array<i32: 1>} : vector<8x128xi32>
      %c10_i32 = arith.constant 10 : i32
      %50 = vector.broadcast %c10_i32 : i32 to vector<8x128xi32>
      %51 = arith.cmpi eq, %49, %50 : vector<8x128xi32>
      %52 = arith.extui %51 : vector<8x128xi1> to vector<8x128xi32>
      %53 = arith.sitofp %52 : vector<8x128xi32> to vector<8x128xf32>
      %cst_22 = arith.constant 0.000000e+00 : f32
      %54 = vector.shape_cast %48 : vector<8x1xi1> to vector<8x1xi1>
      %55 = vector.broadcast %54 : vector<8x1xi1> to vector<8x128xi1>
      %56 = vector.broadcast %cst_22 : f32 to vector<8x128xf32>
      %57 = arith.select %55, %56, %53 : vector<8x128xi1>, vector<8x128xf32>
      %c0_23 = arith.constant 0 : index
      %c0_24 = arith.constant 0 : index
      %58 = vector.load %arg6[%c0_23, %c0_24] : memref<8x128xf32, #tpu.memory_space<vmem>>, vector<8x128xf32>
      tpu.vector_store %arg6[%c0_23, %c0_24], %57 {strides = array<i32>} : memref<8x128xf32, #tpu.memory_space<vmem>>, vector<8x128xf32>,
      %cst_25 = arith.constant 0.000000e+00 : f32
      %59 = vector.shape_cast %48 : vector<8x1xi1> to vector<8x1xi1>
      %60 = vector.broadcast %59 : vector<8x1xi1> to vector<8x10xi1>
      %61 = vector.broadcast %cst_25 : f32 to vector<8x10xf32>
      %62 = arith.select %60, %44, %61 : vector<8x10xi1>, vector<8x10xf32>
      %c0_26 = arith.constant 0 : index
      %c0_27 = arith.constant 0 : index
      %63 = vector.load %arg6[%c0_26, %c0_27] : memref<8x128xf32, #tpu.memory_space<vmem>>, vector<8x10xf32>
      tpu.vector_store %arg6[%c0_26, %c0_27], %62 {strides = array<i32>} : memref<8x128xf32, #tpu.memory_space<vmem>>, vector<8x10xf32>,
    } else {
    }
    return
  }
  func.func @transform_0(%arg0: i32, %arg1: i32) -> (i32, i32) {
    %c0_i32 = arith.constant 0 : i32
    return %arg0, %arg1 : i32, i32
  }
  func.func @transform_1(%arg0: i32, %arg1: i32) -> (i32, i32) {
    %c0_i32 = arith.constant 0 : i32
    %c0_i32_0 = arith.constant 0 : i32
    return %arg1, %c0_i32 : i32, i32
  }
  func.func @transform_2(%arg0: i32, %arg1: i32) -> (i32, i32) {
    %c0_i32 = arith.constant 0 : i32
    %c0_i32_0 = arith.constant 0 : i32
    %c0_i32_1 = arith.constant 0 : i32
    return %c0_i32, %c0_i32_0 : i32, i32
  }
  func.func @transform_3(%arg0: i32, %arg1: i32) -> (i32, i32) {
    %c0_i32 = arith.constant 0 : i32
    %c0_i32_0 = arith.constant 0 : i32
    return %arg0, %c0_i32 : i32, i32
  }
  func.func @transform_4(%arg0: i32, %arg1: i32) -> (i32, i32) {
    %c0_i32 = arith.constant 0 : i32
    %c0_i32_0 = arith.constant 0 : i32
    return %arg0, %c0_i32 : i32, i32
  }
}

</mosaic_0001>

<llo_original>
// kernel: tpu_custom_call.1
$region0: #{tpu_custom_call.1}
  #allocation0 [shape = 'u32[]', space=smem, size = 0x4, offset = 0x4, fixed_abs, tag = 'smem constant byte address 0x4 - core index']
  #allocation1 [shape = 'u32[144,128]{1,0:T(1,128)}', space=vmem, size = 0x12000, scoped, tag = 'internal scratch']
  #allocation2 [shape = 'f32[8,30]{1,0:T(8,128)}', space=vmem, size = 0x1000, scoped, tag = 'scratch operand']
  %s0 = inlined_call_operand.vmem [shape: f32[8,1024], index: 0, kind: input, shape index: {}]
  %s1 = inlined_call_operand.vmem [shape: bf16[1024,30], index: 1, kind: input, shape index: {}]
  %s2 = inlined_call_operand.vmem [shape: f32[1,30], index: 2, kind: input, shape index: {}]
  %s3 = inlined_call_operand.vmem [shape: bf16[8,30], index: 3, kind: input, shape index: {}]
  %s4 = inlined_call_operand.hbm [shape: f32[8,128], index: 4, kind: output, shape index: {}]
  %s5 = sld [smem:[#allocation0]]
  $region34: #{tpu_custom_call.1} parent=0
    _
  %s7 = ssub.s32 1, %s5
  %s8 = scalar_select 0, %s7, %s5
  $region1: #{tpu_custom_call.1} parent=0
    #allocation3 [shape = 'u8[4096]{0}', space=vmem, size = 0x1000, scoped, tag = 'output window, operand 0, single buffered']
    #allocation4 [shape = 's32[1]{0}', space=sflag, size = 0x4, scoped, tag = 'scoped memory for tpu_custom_call.1']
    %9 = vsyncpa [#allocation4], 0
    // Predicated region
    $region2: #{tpu_custom_call.1} parent=1 // pred_check
      _
    $region3: #{tpu_custom_call.1} parent=1 // pred_check_branch
      %11 = sbr.rel (0) target = $region5
    $region4: #{tpu_custom_call.1} parent=1 // pred_region
      _
    $region5: #{tpu_custom_call.1} parent=1 // pred_fallthru
      _
    // Predicated region
    $region6: #{tpu_custom_call.1} parent=1 // pred_check
      _
    $region7: #{tpu_custom_call.1} parent=1 // pred_check_branch
      %13 = sbr.rel (0) target = $region9
    $region8: #{tpu_custom_call.1} parent=1 // pred_region
      _
    $region9: #{tpu_custom_call.1} parent=1 // pred_fallthru
      _
    // Predicated region
    $region10: #{tpu_custom_call.1} parent=1 // pred_check
      _
    $region11: #{tpu_custom_call.1} parent=1 // pred_check_branch
      %15 = sbr.rel (0) target = $region13
    $region12: #{tpu_custom_call.1} parent=1 // pred_region
      _
    $region13: #{tpu_custom_call.1} parent=1 // pred_fallthru
      _
    // Predicated region
    $region14: #{tpu_custom_call.1} parent=1 // pred_check
      _
    $region15: #{tpu_custom_call.1} parent=1 // pred_check_branch
      %17 = sbr.rel (0) target = $region17
    $region16: #{tpu_custom_call.1} parent=1 // pred_region
      _
    $region17: #{tpu_custom_call.1} parent=1 // pred_fallthru
      _
    %p19 = scmp.eq.s32.totalorder 0, 0
    // Predicated region
    $region18: #{tpu_custom_call.1} parent=1 // pred_check
      %p20 = pneg %p19
    $region19: #{tpu_custom_call.1} parent=1 // pred_check_branch
      %22 = sbr.rel (%p20) target = $region21
    $region20: #{tpu_custom_call.1} parent=1 // pred_region
      %vm23 = vcmask 244736
      %24 = vst.msk [vmem:[#allocation2] sm:$0xff] %vm23, 0.0
    $region21: #{tpu_custom_call.1} parent=1 // pred_fallthru
      _
    %v25 = vld [vmem:[#allocation2] sm:$0xff]
    %v26 = vld [vmem:[%s0] sm:$0xff]
    %v27 = vld [vmem:[%s0 + $0x8] sm:$0xff]
    %v28 = vld [vmem:[%s0 + $0x10] sm:$0xff]
    %v29 = vld [vmem:[%s0 + $0x18] sm:$0xff]
    %v30 = vld [vmem:[%s0 + $0x20] sm:$0xff]
    %v31 = vld [vmem:[%s0 + $0x28] sm:$0xff]
    %v32 = vld [vmem:[%s0 + $0x30] sm:$0xff]
    %v33 = vld [vmem:[%s0 + $0x38] sm:$0xff]
    %v34 = vpack.c.bf16 %v26, %v26
    %v35 = vpack.c.bf16 %v27, %v27
    %v36 = vpack.c.bf16 %v28, %v28
    %v37 = vpack.c.bf16 %v29, %v29
    %v38 = vpack.c.bf16 %v30, %v30
    %v39 = vpack.c.bf16 %v31, %v31
    %v40 = vpack.c.bf16 %v32, %v32
    %v41 = vpack.c.bf16 %v33, %v33
    %v42 = vld [vmem:[%s1] sm:$0xf]
    %v43 = vld [vmem:[%s1 + $0x4] sm:$0xf]
    %v44 = vld [vmem:[%s1 + $0x8] sm:$0xf]
    %v45 = vld [vmem:[%s1 + $0xc] sm:$0xf]
    %v46 = vld [vmem:[%s1 + $0x10] sm:$0xf]
    %v47 = vld [vmem:[%s1 + $0x14] sm:$0xf]
    %v48 = vld [vmem:[%s1 + $0x18] sm:$0xf]
    %v49 = vld [vmem:[%s1 + $0x1c] sm:$0xf]
    %v50 = vld [vmem:[%s1 + $0x20] sm:$0xf]
    %v51 = vld [vmem:[%s1 + $0x24] sm:$0xf]
    %v52 = vld [vmem:[%s1 + $0x28] sm:$0xf]
    %v53 = vld [vmem:[%s1 + $0x2c] sm:$0xf]
    %v54 = vld [vmem:[%s1 + $0x30] sm:$0xf]
    %v55 = vld [vmem:[%s1 + $0x34] sm:$0xf]
    %v56 = vld [vmem:[%s1 + $0x38] sm:$0xf]
    %v57 = vld [vmem:[%s1 + $0x3c] sm:$0xf]
    %v58 = vld [vmem:[%s1 + $0x40] sm:$0xf]
    %v59 = vld [vmem:[%s1 + $0x44] sm:$0xf]
    %v60 = vld [vmem:[%s1 + $0x48] sm:$0xf]
    %v61 = vld [vmem:[%s1 + $0x4c] sm:$0xf]
    %v62 = vld [vmem:[%s1 + $0x50] sm:$0xf]
    %v63 = vld [vmem:[%s1 + $0x54] sm:$0xf]
    %v64 = vld [vmem:[%s1 + $0x58] sm:$0xf]
    %v65 = vld [vmem:[%s1 + $0x5c] sm:$0xf]
    %v66 = vld [vmem:[%s1 + $0x60] sm:$0xf]
    %v67 = vld [vmem:[%s1 + $0x64] sm:$0xf]
    %v68 = vld [vmem:[%s1 + $0x68] sm:$0xf]
    %v69 = vld [vmem:[%s1 + $0x6c] sm:$0xf]
    %v70 = vld [vmem:[%s1 + $0x70] sm:$0xf]
    %v71 = vld [vmem:[%s1 + $0x74] sm:$0xf]
    %v72 = vld [vmem:[%s1 + $0x78] sm:$0xf]
    %v73 = vld [vmem:[%s1 + $0x7c] sm:$0xf]
    %v74 = vld [vmem:[%s1 + $0x80] sm:$0xf]
    %v75 = vld [vmem:[%s1 + $0x84] sm:$0xf]
    %v76 = vld [vmem:[%s1 + $0x88] sm:$0xf]
    %v77 = vld [vmem:[%s1 + $0x8c] sm:$0xf]
    %v78 = vld [vmem:[%s1 + $0x90] sm:$0xf]
    %v79 = vld [vmem:[%s1 + $0x94] sm:$0xf]
    %v80 = vld [vmem:[%s1 + $0x98] sm:$0xf]
    %v81 = vld [vmem:[%s1 + $0x9c] sm:$0xf]
    %v82 = vld [vmem:[%s1 + $0xa0] sm:$0xf]
    %v83 = vld [vmem:[%s1 + $0xa4] sm:$0xf]
    %v84 = vld [vmem:[%s1 + $0xa8] sm:$0xf]
    %v85 = vld [vmem:[%s1 + $0xac] sm:$0xf]
    %v86 = vld [vmem:[%s1 + $0xb0] sm:$0xf]
    %v87 = vld [vmem:[%s1 + $0xb4] sm:$0xf]
    %v88 = vld [vmem:[%s1 + $0xb8] sm:$0xf]
    %v89 = vld [vmem:[%s1 + $0xbc] sm:$0xf]
    %v90 = vld [vmem:[%s1 + $0xc0] sm:$0xf]
    %v91 = vld [vmem:[%s1 + $0xc4] sm:$0xf]
    %v92 = vld [vmem:[%s1 + $0xc8] sm:$0xf]
    %v93 = vld [vmem:[%s1 + $0xcc] sm:$0xf]
    %v94 = vld [vmem:[%s1 + $0xd0] sm:$0xf]
    %v95 = vld [vmem:[%s1 + $0xd4] sm:$0xf]
    %v96 = vld [vmem:[%s1 + $0xd8] sm:$0xf]
    %v97 = vld [vmem:[%s1 + $0xdc] sm:$0xf]
    %v98 = vld [vmem:[%s1 + $0xe0] sm:$0xf]
    %v99 = vld [vmem:[%s1 + $0xe4] sm:$0xf]
    %v100 = vld [vmem:[%s1 + $0xe8] sm:$0xf]
    %v101 = vld [vmem:[%s1 + $0xec] sm:$0xf]
    %v102 = vld [vmem:[%s1 + $0xf0] sm:$0xf]
    %v103 = vld [vmem:[%s1 + $0xf4] sm:$0xf]
    %v104 = vld [vmem:[%s1 + $0xf8] sm:$0xf]
    %v105 = vld [vmem:[%s1 + $0xfc] sm:$0xf]
    %v106 = vld [vmem:[%s1 + $0x100] sm:$0xf]
    %v107 = vld [vmem:[%s1 + $0x104] sm:$0xf]
    %v108 = vld [vmem:[%s1 + $0x108] sm:$0xf]
    %v109 = vld [vmem:[%s1 + $0x10c] sm:$0xf]
    %v110 = vld [vmem:[%s1 + $0x110] sm:$0xf]
    %v111 = vld [vmem:[%s1 + $0x114] sm:$0xf]
    %v112 = vld [vmem:[%s1 + $0x118] sm:$0xf]
    %v113 = vld [vmem:[%s1 + $0x11c] sm:$0xf]
    %v114 = vld [vmem:[%s1 + $0x120] sm:$0xf]
    %v115 = vld [vmem:[%s1 + $0x124] sm:$0xf]
    %v116 = vld [vmem:[%s1 + $0x128] sm:$0xf]
    %v117 = vld [vmem:[%s1 + $0x12c] sm:$0xf]
    %v118 = vld [vmem:[%s1 + $0x130] sm:$0xf]
    %v119 = vld [vmem:[%s1 + $0x134] sm:$0xf]
    %v120 = vld [vmem:[%s1 + $0x138] sm:$0xf]
    %v121 = vld [vmem:[%s1 + $0x13c] sm:$0xf]
    %v122 = vld [vmem:[%s1 + $0x140] sm:$0xf]
    %v123 = vld [vmem:[%s1 + $0x144] sm:$0xf]
    %v124 = vld [vmem:[%s1 + $0x148] sm:$0xf]
    %v125 = vld [vmem:[%s1 + $0x14c] sm:$0xf]
    %v126 = vld [vmem:[%s1 + $0x150] sm:$0xf]
    %v127 = vld [vmem:[%s1 + $0x154] sm:$0xf]
    %v128 = vld [vmem:[%s1 + $0x158] sm:$0xf]
    %v129 = vld [vmem:[%s1 + $0x15c] sm:$0xf]
    %v130 = vld [vmem:[%s1 + $0x160] sm:$0xf]
    %v131 = vld [vmem:[%s1 + $0x164] sm:$0xf]
    %v132 = vld [vmem:[%s1 + $0x168] sm:$0xf]
    %v133 = vld [vmem:[%s1 + $0x16c] sm:$0xf]
    %v134 = vld [vmem:[%s1 + $0x170] sm:$0xf]
    %v135 = vld [vmem:[%s1 + $0x174] sm:$0xf]
    %v136 = vld [vmem:[%s1 + $0x178] sm:$0xf]
    %v137 = vld [vmem:[%s1 + $0x17c] sm:$0xf]
    %v138 = vld [vmem:[%s1 + $0x180] sm:$0xf]
    %v139 = vld [vmem:[%s1 + $0x184] sm:$0xf]
    %v140 = vld [vmem:[%s1 + $0x188] sm:$0xf]
    %v141 = vld [vmem:[%s1 + $0x18c] sm:$0xf]
    %v142 = vld [vmem:[%s1 + $0x190] sm:$0xf]
    %v143 = vld [vmem:[%s1 + $0x194] sm:$0xf]
    %v144 = vld [vmem:[%s1 + $0x198] sm:$0xf]
    %v145 = vld [vmem:[%s1 + $0x19c] sm:$0xf]
    %v146 = vld [vmem:[%s1 + $0x1a0] sm:$0xf]
    %v147 = vld [vmem:[%s1 + $0x1a4] sm:$0xf]
    %v148 = vld [vmem:[%s1 + $0x1a8] sm:$0xf]
    %v149 = vld [vmem:[%s1 + $0x1ac] sm:$0xf]
    %v150 = vld [vmem:[%s1 + $0x1b0] sm:$0xf]
    %v151 = vld [vmem:[%s1 + $0x1b4] sm:$0xf]
    %v152 = vld [vmem:[%s1 + $0x1b8] sm:$0xf]
    %v153 = vld [vmem:[%s1 + $0x1bc] sm:$0xf]
    %v154 = vld [vmem:[%s1 + $0x1c0] sm:$0xf]
    %v155 = vld [vmem:[%s1 + $0x1c4] sm:$0xf]
    %v156 = vld [vmem:[%s1 + $0x1c8] sm:$0xf]
    %v157 = vld [vmem:[%s1 + $0x1cc] sm:$0xf]
    %v158 = vld [vmem:[%s1 + $0x1d0] sm:$0xf]
    %v159 = vld [vmem:[%s1 + $0x1d4] sm:$0xf]
    %v160 = vld [vmem:[%s1 + $0x1d8] sm:$0xf]
    %v161 = vld [vmem:[%s1 + $0x1dc] sm:$0xf]
    %v162 = vld [vmem:[%s1 + $0x1e0] sm:$0xf]
    %v163 = vld [vmem:[%s1 + $0x1e4] sm:$0xf]
    %v164 = vld [vmem:[%s1 + $0x1e8] sm:$0xf]
    %v165 = vld [vmem:[%s1 + $0x1ec] sm:$0xf]
    %v166 = vld [vmem:[%s1 + $0x1f0] sm:$0xf]
    %v167 = vld [vmem:[%s1 + $0x1f4] sm:$0xf]
    %v168 = vld [vmem:[%s1 + $0x1f8] sm:$0xf]
    %v169 = vld [vmem:[%s1 + $0x1fc] sm:$0xf]
    %v298 = vunpack.c.l.b16 %v42
    %v299 = vunpack.c.l.b16 %v43
    %v300 = vunpack.c.l.b16 %v44
    %v301 = vunpack.c.l.b16 %v45
    %v302 = vunpack.c.l.b16 %v46
    %v303 = vunpack.c.l.b16 %v47
    %v304 = vunpack.c.l.b16 %v48
    %v305 = vunpack.c.l.b16 %v49
    %v306 = vunpack.c.l.b16 %v50
    %v307 = vunpack.c.l.b16 %v51
    %v308 = vunpack.c.l.b16 %v52
    %v309 = vunpack.c.l.b16 %v53
    %v310 = vunpack.c.l.b16 %v54
    %v311 = vunpack.c.l.b16 %v55
    %v312 = vunpack.c.l.b16 %v56
    %v313 = vunpack.c.l.b16 %v57
    %v314 = vunpack.c.l.b16 %v58
    %v315 = vunpack.c.l.b16 %v59
    %v316 = vunpack.c.l.b16 %v60
    %v317 = vunpack.c.l.b16 %v61
    %v318 = vunpack.c.l.b16 %v62
    %v319 = vunpack.c.l.b16 %v63
    %v320 = vunpack.c.l.b16 %v64
    %v321 = vunpack.c.l.b16 %v65
    %v322 = vunpack.c.l.b16 %v66
    %v323 = vunpack.c.l.b16 %v67
    %v324 = vunpack.c.l.b16 %v68
    %v325 = vunpack.c.l.b16 %v69
    %v326 = vunpack.c.l.b16 %v70
    %v327 = vunpack.c.l.b16 %v71
    %v328 = vunpack.c.l.b16 %v72
    %v329 = vunpack.c.l.b16 %v73
    %v330 = vunpack.c.l.b16 %v74
    %v331 = vunpack.c.l.b16 %v75
    %v332 = vunpack.c.l.b16 %v76
    %v333 = vunpack.c.l.b16 %v77
    %v334 = vunpack.c.l.b16 %v78
    %v335 = vunpack.c.l.b16 %v79
    %v336 = vunpack.c.l.b16 %v80
    %v337 = vunpack.c.l.b16 %v81
    %v338 = vunpack.c.l.b16 %v82
    %v339 = vunpack.c.l.b16 %v83
    %v340 = vunpack.c.l.b16 %v84
    %v341 = vunpack.c.l.b16 %v85
    %v342 = vunpack.c.l.b16 %v86
    %v343 = vunpack.c.l.b16 %v87
    %v344 = vunpack.c.l.b16 %v88
    %v345 = vunpack.c.l.b16 %v89
    %v346 = vunpack.c.l.b16 %v90
    %v347 = vunpack.c.l.b16 %v91
    %v348 = vunpack.c.l.b16 %v92
    %v349 = vunpack.c.l.b16 %v93
    %v350 = vunpack.c.l.b16 %v94
    %v351 = vunpack.c.l.b16 %v95
    %v352 = vunpack.c.l.b16 %v96
    %v353 = vunpack.c.l.b16 %v97
    %v354 = vunpack.c.l.b16 %v98
    %v355 = vunpack.c.l.b16 %v99
    %v356 = vunpack.c.l.b16 %v100
    %v357 = vunpack.c.l.b16 %v101
    %v358 = vunpack.c.l.b16 %v102
    %v359 = vunpack.c.l.b16 %v103
    %v360 = vunpack.c.l.b16 %v104
    %v361 = vunpack.c.l.b16 %v105
    %v362 = vunpack.c.l.b16 %v106
    %v363 = vunpack.c.l.b16 %v107
    %v364 = vunpack.c.l.b16 %v108
    %v365 = vunpack.c.l.b16 %v109
    %v366 = vunpack.c.l.b16 %v110
    %v367 = vunpack.c.l.b16 %v111
    %v368 = vunpack.c.l.b16 %v112
    %v369 = vunpack.c.l.b16 %v113
    %v370 = vunpack.c.l.b16 %v114
    %v371 = vunpack.c.l.b16 %v115
    %v372 = vunpack.c.l.b16 %v116
    %v373 = vunpack.c.l.b16 %v117
    %v374 = vunpack.c.l.b16 %v118
    %v375 = vunpack.c.l.b16 %v119
    %v376 = vunpack.c.l.b16 %v120
    %v377 = vunpack.c.l.b16 %v121
    %v378 = vunpack.c.l.b16 %v122
    %v379 = vunpack.c.l.b16 %v123
    %v380 = vunpack.c.l.b16 %v124
    %v381 = vunpack.c.l.b16 %v125
    %v382 = vunpack.c.l.b16 %v126
    %v383 = vunpack.c.l.b16 %v127
    %v384 = vunpack.c.l.b16 %v128
    %v385 = vunpack.c.l.b16 %v129
    %v386 = vunpack.c.l.b16 %v130
    %v387 = vunpack.c.l.b16 %v131
    %v388 = vunpack.c.l.b16 %v132
    %v389 = vunpack.c.l.b16 %v133
    %v390 = vunpack.c.l.b16 %v134
    %v391 = vunpack.c.l.b16 %v135
    %v392 = vunpack.c.l.b16 %v136
    %v393 = vunpack.c.l.b16 %v137
    %v394 = vunpack.c.l.b16 %v138
    %v395 = vunpack.c.l.b16 %v139
    %v396 = vunpack.c.l.b16 %v140
    %v397 = vunpack.c.l.b16 %v141
    %v398 = vunpack.c.l.b16 %v142
    %v399 = vunpack.c.l.b16 %v143
    %v400 = vunpack.c.l.b16 %v144
    %v401 = vunpack.c.l.b16 %v145
    %v402 = vunpack.c.l.b16 %v146
    %v403 = vunpack.c.l.b16 %v147
    %v404 = vunpack.c.l.b16 %v148
    %v405 = vunpack.c.l.b16 %v149
    %v406 = vunpack.c.l.b16 %v150
    %v407 = vunpack.c.l.b16 %v151
    %v408 = vunpack.c.l.b16 %v152
    %v409 = vunpack.c.l.b16 %v153
    %v410 = vunpack.c.l.b16 %v154
    %v411 = vunpack.c.l.b16 %v155
    %v412 = vunpack.c.l.b16 %v156
    %v413 = vunpack.c.l.b16 %v157
    %v414 = vunpack.c.l.b16 %v158
    %v415 = vunpack.c.l.b16 %v159
    %v416 = vunpack.c.l.b16 %v160
    %v417 = vunpack.c.l.b16 %v161
    %v418 = vunpack.c.l.b16 %v162
    %v419 = vunpack.c.l.b16 %v163
    %v420 = vunpack.c.l.b16 %v164
    %v421 = vunpack.c.l.b16 %v165
    %v422 = vunpack.c.l.b16 %v166
    %v423 = vunpack.c.l.b16 %v167
    %v424 = vunpack.c.l.b16 %v168
    %v425 = vunpack.c.l.b16 %v169
    %v426 = vpack.c.b16 %v299, %v298
    %v427 = vpack.c.b16 %v301, %v300
    %v428 = vpack.c.b16 %v303, %v302
    %v429 = vpack.c.b16 %v305, %v304
    %v430 = vpack.c.b16 %v307, %v306
    %v431 = vpack.c.b16 %v309, %v308
    %v432 = vpack.c.b16 %v311, %v310
    %v433 = vpack.c.b16 %v313, %v312
    %v434 = vpack.c.b16 %v315, %v314
    %v435 = vpack.c.b16 %v317, %v316
    %v436 = vpack.c.b16 %v319, %v318
    %v437 = vpack.c.b16 %v321, %v320
    %v438 = vpack.c.b16 %v323, %v322
    %v439 = vpack.c.b16 %v325, %v324
    %v440 = vpack.c.b16 %v327, %v326
    %v441 = vpack.c.b16 %v329, %v328
    %v442 = vpack.c.b16 %v331, %v330
    %v443 = vpack.c.b16 %v333, %v332
    %v444 = vpack.c.b16 %v335, %v334
    %v445 = vpack.c.b16 %v337, %v336
    %v446 = vpack.c.b16 %v339, %v338
    %v447 = vpack.c.b16 %v341, %v340
    %v448 = vpack.c.b16 %v343, %v342
    %v449 = vpack.c.b16 %v345, %v344
    %v450 = vpack.c.b16 %v347, %v346
    %v451 = vpack.c.b16 %v349, %v348
    %v452 = vpack.c.b16 %v351, %v350
    %v453 = vpack.c.b16 %v353, %v352
    %v454 = vpack.c.b16 %v355, %v354
    %v455 = vpack.c.b16 %v357, %v356
    %v456 = vpack.c.b16 %v359, %v358
    %v457 = vpack.c.b16 %v361, %v360
    %v458 = vpack.c.b16 %v363, %v362
    %v459 = vpack.c.b16 %v365, %v364
    %v460 = vpack.c.b16 %v367, %v366
    %v461 = vpack.c.b16 %v369, %v368
    %v462 = vpack.c.b16 %v371, %v370
    %v463 = vpack.c.b16 %v373, %v372
    %v464 = vpack.c.b16 %v375, %v374
    %v465 = vpack.c.b16 %v377, %v376
    %v466 = vpack.c.b16 %v379, %v378
    %v467 = vpack.c.b16 %v381, %v380
    %v468 = vpack.c.b16 %v383, %v382
    %v469 = vpack.c.b16 %v385, %v384
    %v470 = vpack.c.b16 %v387, %v386
    %v471 = vpack.c.b16 %v389, %v388
    %v472 = vpack.c.b16 %v391, %v390
    %v473 = vpack.c.b16 %v393, %v392
    %v474 = vpack.c.b16 %v395, %v394
    %v475 = vpack.c.b16 %v397, %v396
    %v476 = vpack.c.b16 %v399, %v398
    %v477 = vpack.c.b16 %v401, %v400
    %v478 = vpack.c.b16 %v403, %v402
    %v479 = vpack.c.b16 %v405, %v404
    %v480 = vpack.c.b16 %v407, %v406
    %v481 = vpack.c.b16 %v409, %v408
    %v482 = vpack.c.b16 %v411, %v410
    %v483 = vpack.c.b16 %v413, %v412
    %v484 = vpack.c.b16 %v415, %v414
    %v485 = vpack.c.b16 %v417, %v416
    %v486 = vpack.c.b16 %v419, %v418
    %v487 = vpack.c.b16 %v421, %v420
    %v488 = vpack.c.b16 %v423, %v422
    %v489 = vpack.c.b16 %v425, %v424
    %554 = vmatprep.subr.bf16.mxu0 0
    %555 = vmatpush1.bf16.msra.mxu0 %v433
    %556 = vmatprep.subr.bf16.mxu0 0
    %557 = vmatpush1.bf16.msra.mxu0 %v432
    %558 = vmatprep.subr.bf16.mxu0 0
    %559 = vmatpush1.bf16.msra.mxu0 %v431
    %560 = vmatprep.subr.bf16.mxu0 0
    %561 = vmatpush1.bf16.msra.mxu0 %v430
    %562 = vmatprep.subr.bf16.mxu0 0
    %563 = vmatpush1.bf16.msra.mxu0 %v429
    %564 = vmatprep.subr.bf16.mxu0 0
    %565 = vmatpush1.bf16.msra.mxu0 %v428
    %566 = vmatprep.subr.bf16.mxu0 0
    %567 = vmatpush1.bf16.msra.mxu0 %v427
    %568 = vmatprep.subr.bf16.mxu0 0
    %569 = vmatpush1.bf16.msra.mxu0 %v426
    %570 = vmatprep.subr.bf16.mxu0 0
    %571 = vmatpush2.bf16.msra.mxu0 %v441
    %572 = vmatprep.subr.bf16.mxu0 0
    %573 = vmatpush2.bf16.msra.mxu0 %v440
    %574 = vmatprep.subr.bf16.mxu0 0
    %575 = vmatpush2.bf16.msra.mxu0 %v439
    %576 = vmatprep.subr.bf16.mxu0 0
    %577 = vmatpush2.bf16.msra.mxu0 %v438
    %578 = vmatprep.subr.bf16.mxu0 0
    %579 = vmatpush2.bf16.msra.mxu0 %v437
    %580 = vmatprep.subr.bf16.mxu0 0
    %581 = vmatpush2.bf16.msra.mxu0 %v436
    %582 = vmatprep.subr.bf16.mxu0 0
    %583 = vmatpush2.bf16.msra.mxu0 %v435
    %584 = vmatprep.subr.bf16.mxu0 0
    %585 = vmatpush2.bf16.msra.mxu0 %v434
    %586 = vmatprep.mubr.bf16.mxu0 %v35
    %587 = vmatmul.mubr.bf16.gmra.mxu0 %v34
    %v588 = vpop.f32.mrf.mxu0
    %v589 = vadd.f32 0.0, %v588
    %v590 = vpop.f32.mrf.mxu0
    %v591 = vpop.f32.mrf.mxu0
    %v592 = vpop.f32.mrf.mxu0
    %593 = vdwg.mxu0
    %594 = vmatprep.subr.bf16.mxu0 0
    %595 = vmatpush1.bf16.msra.mxu0 %v449
    %596 = vmatprep.subr.bf16.mxu0 0
    %597 = vmatpush1.bf16.msra.mxu0 %v448
    %598 = vmatprep.subr.bf16.mxu0 0
    %599 = vmatpush1.bf16.msra.mxu0 %v447
    %600 = vmatprep.subr.bf16.mxu0 0
    %601 = vmatpush1.bf16.msra.mxu0 %v446
    %602 = vmatprep.subr.bf16.mxu0 0
    %603 = vmatpush1.bf16.msra.mxu0 %v445
    %604 = vmatprep.subr.bf16.mxu0 0
    %605 = vmatpush1.bf16.msra.mxu0 %v444
    %606 = vmatprep.subr.bf16.mxu0 0
    %607 = vmatpush1.bf16.msra.mxu0 %v443
    %608 = vmatprep.subr.bf16.mxu0 0
    %609 = vmatpush1.bf16.msra.mxu0 %v442
    %610 = vmatprep.subr.bf16.mxu0 0
    %611 = vmatpush2.bf16.msra.mxu0 %v457
    %612 = vmatprep.subr.bf16.mxu0 0
    %613 = vmatpush2.bf16.msra.mxu0 %v456
    %614 = vmatprep.subr.bf16.mxu0 0
    %615 = vmatpush2.bf16.msra.mxu0 %v455
    %616 = vmatprep.subr.bf16.mxu0 0
    %617 = vmatpush2.bf16.msra.mxu0 %v454
    %618 = vmatprep.subr.bf16.mxu0 0
    %619 = vmatpush2.bf16.msra.mxu0 %v453
    %620 = vmatprep.subr.bf16.mxu0 0
    %621 = vmatpush2.bf16.msra.mxu0 %v452
    %622 = vmatprep.subr.bf16.mxu0 0
    %623 = vmatpush2.bf16.msra.mxu0 %v451
    %624 = vmatprep.subr.bf16.mxu0 0
    %625 = vmatpush2.bf16.msra.mxu0 %v450
    %626 = vmatprep.mubr.bf16.mxu0 %v37
    %627 = vmatmul.mubr.bf16.gmra.mxu0 %v36
    %v628 = vpop.f32.mrf.mxu0
    %v629 = vadd.f32 %v589, %v628
    %v630 = vpop.f32.mrf.mxu0
    %v631 = vpop.f32.mrf.mxu0
    %v632 = vpop.f32.mrf.mxu0
    %633 = vdwg.mxu0
    %634 = vmatprep.subr.bf16.mxu0 0
    %635 = vmatpush1.bf16.msra.mxu0 %v465
    %636 = vmatprep.subr.bf16.mxu0 0
    %637 = vmatpush1.bf16.msra.mxu0 %v464
    %638 = vmatprep.subr.bf16.mxu0 0
    %639 = vmatpush1.bf16.msra.mxu0 %v463
    %640 = vmatprep.subr.bf16.mxu0 0
    %641 = vmatpush1.bf16.msra.mxu0 %v462
    %642 = vmatprep.subr.bf16.mxu0 0
    %643 = vmatpush1.bf16.msra.mxu0 %v461
    %644 = vmatprep.subr.bf16.mxu0 0
    %645 = vmatpush1.bf16.msra.mxu0 %v460
    %646 = vmatprep.subr.bf16.mxu0 0
    %647 = vmatpush1.bf16.msra.mxu0 %v459
    %648 = vmatprep.subr.bf16.mxu0 0
    %649 = vmatpush1.bf16.msra.mxu0 %v458
    %650 = vmatprep.subr.bf16.mxu0 0
    %651 = vmatpush2.bf16.msra.mxu0 %v473
    %652 = vmatprep.subr.bf16.mxu0 0
    %653 = vmatpush2.bf16.msra.mxu0 %v472
    %654 = vmatprep.subr.bf16.mxu0 0
    %655 = vmatpush2.bf16.msra.mxu0 %v471
    %656 = vmatprep.subr.bf16.mxu0 0
    %657 = vmatpush2.bf16.msra.mxu0 %v470
    %658 = vmatprep.subr.bf16.mxu0 0
    %659 = vmatpush2.bf16.msra.mxu0 %v469
    %660 = vmatprep.subr.bf16.mxu0 0
    %661 = vmatpush2.bf16.msra.mxu0 %v468
    %662 = vmatprep.subr.bf16.mxu0 0
    %663 = vmatpush2.bf16.msra.mxu0 %v467
    %664 = vmatprep.subr.bf16.mxu0 0
    %665 = vmatpush2.bf16.msra.mxu0 %v466
    %666 = vmatprep.mubr.bf16.mxu0 %v39
    %667 = vmatmul.mubr.bf16.gmra.mxu0 %v38
    %v668 = vpop.f32.mrf.mxu0
    %v669 = vadd.f32 %v629, %v668
    %v670 = vpop.f32.mrf.mxu0
    %v671 = vpop.f32.mrf.mxu0
    %v672 = vpop.f32.mrf.mxu0
    %673 = vdwg.mxu0
    %674 = vmatprep.subr.bf16.mxu0 0
    %675 = vmatpush1.bf16.msra.mxu0 %v481
    %676 = vmatprep.subr.bf16.mxu0 0
    %677 = vmatpush1.bf16.msra.mxu0 %v480
    %678 = vmatprep.subr.bf16.mxu0 0
    %679 = vmatpush1.bf16.msra.mxu0 %v479
    %680 = vmatprep.subr.bf16.mxu0 0
    %681 = vmatpush1.bf16.msra.mxu0 %v478
    %682 = vmatprep.subr.bf16.mxu0 0
    %683 = vmatpush1.bf16.msra.mxu0 %v477
    %684 = vmatprep.subr.bf16.mxu0 0
    %685 = vmatpush1.bf16.msra.mxu0 %v476
    %686 = vmatprep.subr.bf16.mxu0 0
    %687 = vmatpush1.bf16.msra.mxu0 %v475
    %688 = vmatprep.subr.bf16.mxu0 0
    %689 = vmatpush1.bf16.msra.mxu0 %v474
    %690 = vmatprep.subr.bf16.mxu0 0
    %691 = vmatpush2.bf16.msra.mxu0 %v489
    %692 = vmatprep.subr.bf16.mxu0 0
    %693 = vmatpush2.bf16.msra.mxu0 %v488
    %694 = vmatprep.subr.bf16.mxu0 0
    %695 = vmatpush2.bf16.msra.mxu0 %v487
    %696 = vmatprep.subr.bf16.mxu0 0
    %697 = vmatpush2.bf16.msra.mxu0 %v486
    %698 = vmatprep.subr.bf16.mxu0 0
    %699 = vmatpush2.bf16.msra.mxu0 %v485
    %700 = vmatprep.subr.bf16.mxu0 0
    %701 = vmatpush2.bf16.msra.mxu0 %v484
    %702 = vmatprep.subr.bf16.mxu0 0
    %703 = vmatpush2.bf16.msra.mxu0 %v483
    %704 = vmatprep.subr.bf16.mxu0 0
    %705 = vmatpush2.bf16.msra.mxu0 %v482
    %706 = vmatprep.mubr.bf16.mxu0 %v41
    %707 = vmatmul.mubr.bf16.gmra.mxu0 %v40
    %v708 = vpop.f32.mrf.mxu0
    %v709 = vadd.f32 %v669, %v708
    %v710 = vpop.f32.mrf.mxu0
    %v711 = vpop.f32.mrf.mxu0
    %v712 = vpop.f32.mrf.mxu0
    %713 = vdwg.mxu0
    %v714 = vadd.f32 %v25, %v709
    %vm715 = vcmask 244736
    %716 = vst.msk [vmem:[#allocation2] sm:$0xff] %vm715, %v714
    // Predicated region
    $region22: #{tpu_custom_call.1} parent=1 // pred_check
      %p717 = pneg %p19
    $region23: #{tpu_custom_call.1} parent=1 // pred_check_branch
      %719 = sbr.rel (%p717) target = $region25
    $region24: #{tpu_custom_call.1} parent=1 // pred_region
      %v720 = vld [vmem:[#allocation2] sm:$0xff]
      %v721 = vld [vmem:[%s2] sm:$0x1]
      %v723 = vlaneseq
      %v724 = vshrl.u32 %v723, 7
      %v725 = vsub.s32 0, %v724
      %v726 = vrot.slane %v721, %v725
      %v728 = vadd.f32 %v720, %v726
      %v729 = vld [vmem:[%s3] sm:$0xf]
      %v730 = vunpack.c.l.bf16 %v729
      %v731 = vadd.f32 %v728, %v730
      %vm732 = vcmask 80896
      %v733 = vsel %vm732, %v731, -inf
      %734 = vmax.xlane.f32.xlu0 %v733
      %v735 = vpop.xlane.xlu0 %734
      %vm736 = vcmp.eq.f32.partialorder %v731, %v735
      %v737 = vsel %vm736, 1, 0
      %v738 = vcvt.s32.f32 %v737
      %v739 = vadd.f32 %v738, 0.0
      %vm740 = vcmask 162896
      %v741 = vsel %vm740, %v731, -inf
      %742 = vmax.xlane.f32.xlu0 %v741
      %v743 = vpop.xlane.xlu0 %742
      %vm744 = vcmp.eq.f32.partialorder %v731, %v743
      %v745 = vsel %vm744, 1, 0
      %v746 = vcvt.s32.f32 %v745
      %748 = vrot.lane.b32.xlu0 %v746, 118
      %v749 = vpop.permute.xlu0 %748
      %v751 = vadd.f32 %v739, %v749
      %vm752 = vcmask 244896
      %v753 = vsel %vm752, %v731, -inf
      %754 = vmax.xlane.f32.xlu0 %v753
      %v755 = vpop.xlane.xlu0 %754
      %vm756 = vcmp.eq.f32.partialorder %v731, %v755
      %v757 = vsel %vm756, 1, 0
      %v758 = vcvt.s32.f32 %v757
      %760 = vrot.lane.b32.xlu0 %v758, 108
      %v761 = vpop.permute.xlu0 %760
      %v763 = vadd.f32 %v751, %v761
      %v764 = vsel %vm732, %v763, -inf
      %765 = vmax.xlane.f32.xlu0 %v764
      %v766 = vpop.xlane.xlu0 %765
      %vm767 = vcmp.ge.f32.partialorder %v766, 3.0
      %v768 = vlaneseq
      %v769 = vand.u32 %v768, 127
      %vm770 = vcmp.eq.s32.totalorder %v769, 10
      %v771 = vsel %vm770, 1, 0
      %v772 = vcvt.s32.f32 %v771
      %v773 = vsel %vm767, 1, 0
      %vm774 = vcmp.eq.s32.totalorder %v773, 1
      %v775 = vsel %vm774, 0.0, %v772
      %776 = vst [vmem:[#allocation3] sm:$0xff] %v775
      %v777 = vsel %vm774, %v763, 0.0
      %778 = vst.msk [vmem:[#allocation3] sm:$0xff] %vm732, %v777
    $region25: #{tpu_custom_call.1} parent=1 // pred_fallthru
      _
    // Predicated region
    $region26: #{tpu_custom_call.1} parent=1 // pred_check
      _
    $region27: #{tpu_custom_call.1} parent=1 // pred_check_branch
      %780 = sbr.rel (0) target = $region29
    $region28: #{tpu_custom_call.1} parent=1 // pred_region
      %s782 = ssub.s32 128, 128
      %783 = vsyncadd [#allocation4], %s782
      %s785 = sshll.u32 [#allocation3], 4
      %s786 = int_to_ptr.vmem [resolvable:$true] %s785
      %788 = dma.vmem_to_hbm [thread:$0]  %s786, 128, %s4, [#allocation4]
    $region29: #{tpu_custom_call.1} parent=1 // pred_fallthru
      _
    // Predicated region
    $region30: #{tpu_custom_call.1} parent=1 // pred_check
      _
    $region31: #{tpu_custom_call.1} parent=1 // pred_check_branch
      %790 = sbr.rel (0) target = $region33
    $region32: #{tpu_custom_call.1} parent=1 // pred_region
      %791 = dma.done [#allocation4], 128
    $region33: #{tpu_custom_call.1} parent=1 // pred_fallthru
      _
    %792 = vsyncpa [#allocation4], 1

</llo_original>
